<compile_context>
chip_gen: v7x
topology: tpu7x:2x2x1
jax: 0.10.0
libtpu: 0.0.40
codegen_flags: <defaults>
</compile_context>

<pallas_src>
import functools
import math

import jax
import jax.numpy as jnp
import numpy as np
from jax.experimental import pallas as pl
from jax.experimental.pallas import tpu as pltpu

_EPS = 1e-6     # guards degenerate spans (zero width / zero enclosure) against Inf/NaN
_LANES = 128
_CE_TILE_ROWS = 512        # CE N-tile rows; roughly halve for v7x (64 MiB VMEM, 2.3x HBM BW)
_MXU_CLASS_THRESHOLD = 32  # use the MXU one-hot matmul for the class cost when C >= this


def _round_up(x, m):
    return ((x + m - 1) // m) * m


# ---------------------------------------------------------------------------
# Kernel 1: pairwise matching cost, TB samples per grid step (parallel over B)
# ---------------------------------------------------------------------------
def _cost_kernel(logits_ref, pred_spans_ref, tgt_spans_t_ref, tgt_ids_ref, cost_ref,
                 *, w_class, w_span, w_giou):
    logits = logits_ref[...]                                   # [TB, Q, C]
    C = logits.shape[-1]
    TB, _, TPAD = cost_ref.shape

    # softmax over classes; EUP approx reciprocal is fine for the matching cost
    m = jnp.max(logits, axis=-1, keepdims=True)
    e = jnp.exp(logits - m)
    probs = e * pl.reciprocal(jnp.sum(e, axis=-1, keepdims=True), approx=True)   # [TB, Q, C]

    ids = tgt_ids_ref[...]                                     # [TB, 1, TPAD] int32, -1 = pad
    if C >= _MXU_CLASS_THRESHOLD:
        # class cost = -prob[q, tgt_id[t]] as ONE batched MXU pass: probs @ onehot(ids).
        col = jax.lax.broadcasted_iota(jnp.int32, (TB, C, TPAD), 1)
        onehot = (col == ids).astype(jnp.float32)              # [TB, C, TPAD]
        c_class = -jnp.einsum('bqc,bct->bqt', probs, onehot,
                              preferred_element_type=jnp.float32)
        # TODO(synk): for C not a multiple of 128, pad the class dim (bf16 one-hot on
        # v7x, whose MXU has no int path) for full MXU utilization.
    else:
        # tiny class counts: a short static VPU select-accumulate beats an
        # under-filled MXU pass (demo path, C = 4).
        c_class = jnp.zeros(cost_ref.shape, jnp.float32)       # [TB, Q, TPAD]
        for c in range(C):                                     # static unroll, C is small
            c_class = c_class - probs[:, :, c:c + 1] * (ids == c).astype(jnp.float32)

    p = pred_spans_ref[...]                                    # [TB, Q, 2]
    p0 = p[:, :, 0:1]                                          # [TB, Q, 1]
    p1 = p[:, :, 1:2]
    ts = tgt_spans_t_ref[...]                                  # [TB, 2, TPAD]
    t0 = ts[:, 0:1, :]                                         # [TB, 1, TPAD]
    t1 = ts[:, 1:2, :]

    c_span = jnp.abs(p0 - t0) + jnp.abs(p1 - t1)               # [TB, Q, TPAD]

    inter = jnp.maximum(jnp.minimum(p1, t1) - jnp.maximum(p0, t0), 0.0)
    union = (p1 - p0) + (t1 - t0) - inter
    enclose = jnp.maximum(jnp.maximum(p1, t1) - jnp.minimum(p0, t0), 0.0)
    inv_union = pl.reciprocal(jnp.maximum(union, _EPS), approx=True)
    inv_enclose = pl.reciprocal(jnp.maximum(enclose, _EPS), approx=True)
    giou = inter * inv_union - (enclose - union) * inv_enclose

    cost_ref[...] = w_class * c_class + w_span * c_span - w_giou * giou


def pairwise_matching_cost(logits, pred_spans, tgt_spans_t, tgt_ids,
                           w_class, w_span, w_giou, tb):
    B, Q, C = logits.shape
    TPAD = tgt_ids.shape[-1]
    kernel = functools.partial(_cost_kernel, w_class=w_class,
                               w_span=w_span, w_giou=w_giou)
    return pl.pallas_call(
        kernel,
        out_shape=jax.ShapeDtypeStruct((B, Q, TPAD), jnp.float32),
        grid=(B // tb,),
        in_specs=[
            pl.BlockSpec((tb, Q, C), lambda i: (i, 0, 0)),
            pl.BlockSpec((tb, Q, 2), lambda i: (i, 0, 0)),
            pl.BlockSpec((tb, 2, TPAD), lambda i: (i, 0, 0)),
            pl.BlockSpec((tb, 1, TPAD), lambda i: (i, 0, 0)),
        ],
        out_specs=pl.BlockSpec((tb, Q, TPAD), lambda i: (i, 0, 0)),
        # sample chunks are independent -> shard the loop across both TCs on v7x
        compiler_params=pltpu.CompilerParams(dimension_semantics=("parallel",)),
    )(logits, pred_spans, tgt_spans_t, tgt_ids)


# ---------------------------------------------------------------------------
# Kernel 2: set-guidance softmax cross entropy, grid = (layers, N-tiles)
# ---------------------------------------------------------------------------
def _ce_kernel(logits_ref, tgt_ref, out_ref, *, inv_n):
    n_idx = pl.program_id(1)

    @pl.when(n_idx == 0)
    def _():
        out_ref[...] = jnp.zeros_like(out_ref)

    logits = logits_ref[...]                                   # [TN, C]
    tgt = tgt_ref[...]                                         # [TN, 1] int32, -1 = pad row
    m = jnp.max(logits, axis=-1, keepdims=True)
    e = jnp.exp(logits - m)
    lse = m + jnp.log(jnp.sum(e, axis=-1, keepdims=True))      # [TN, 1]
    col = jax.lax.broadcasted_iota(jnp.int32, logits.shape, 1)
    # select-and-sum instead of a float one-hot multiply: no [TN, C] temporary
    tgt_logit = jnp.sum(jnp.where(col == tgt, logits, 0.0),
                        axis=-1, keepdims=True)                # [TN, 1]
    valid = (tgt >= 0).astype(jnp.float32)                     # padded rows contribute 0
    out_ref[...] += jnp.sum((lse - tgt_logit) * valid, axis=0, keepdims=True)

    @pl.when(n_idx == pl.num_programs(1) - 1)
    def _():
        out_ref[...] *= inv_n                                  # torch CE reduction='mean'


def set_guidance_cross_entropy(logits_lnc, tgt_n1, n_valid, tile_rows):
    L, NPAD, C = logits_lnc.shape
    assert NPAD % tile_rows == 0
    kernel = functools.partial(_ce_kernel, inv_n=1.0 / float(n_valid))
    # Optional on v6e/v7x: feed bf16 logits (keep f32 accumulation) to halve the
    # dominant HBM read; kept f32 everywhere for v5e compatibility / parity.
    return pl.pallas_call(
        kernel,
        out_shape=jax.ShapeDtypeStruct((L, 1, 1), jnp.float32),
        grid=(L, NPAD // tile_rows),
        in_specs=[
            pl.BlockSpec((None, tile_rows, C), lambda l, n: (l, n, 0)),
            # targets are identical for every layer -> single [NPAD, 1] upload
            pl.BlockSpec((tile_rows, 1), lambda l, n: (n, 0)),
        ],
        out_specs=pl.BlockSpec((None, 1, 1), lambda l, n: (l, 0, 0)),
        compiler_params=pltpu.CompilerParams(
            dimension_semantics=("parallel", "arbitrary"),
            vmem_limit_bytes=32 * 1024 * 1024),
    )(logits_lnc, tgt_n1)


# ---------------------------------------------------------------------------
# Kernel 3: L1 + (1 - mean GIoU) over matched spans, grid over layers
# ---------------------------------------------------------------------------
def _span_loss_kernel(pred_ref, tgt_ref, w_ref, l1_ref, giou_ref):
    p = pred_ref[...]                                          # [2, MPAD]
    t = tgt_ref[...]                                           # [2, MPAD]
    w = w_ref[...]                                             # [1, MPAD]: 1/M valid, 0 pad

    # F.l1_loss mean over (M matched spans x 2 coords) = 0.5 * sum(|p - t| / M)
    l1_ref[...] = 0.5 * jnp.sum(jnp.sum(jnp.abs(p - t) * w, axis=-1, keepdims=True),
                                axis=0, keepdims=True)         # [1, 1]

    p0 = p[0:1, :]
    p1 = p[1:2, :]
    t0 = t[0:1, :]
    t1 = t[1:2, :]
    inter = jnp.maximum(jnp.minimum(p1, t1) - jnp.maximum(p0, t0), 0.0)
    union = (p1 - p0) + (t1 - t0) - inter
    enclose = jnp.maximum(jnp.maximum(p1, t1) - jnp.minimum(p0, t0), 0.0)
    # exact division (reported loss) -- no approx reciprocal here
    giou = (inter / jnp.maximum(union, _EPS)
            - (enclose - union) / jnp.maximum(enclose, _EPS))  # [1, MPAD]
    giou_ref[...] = 1.0 - jnp.sum(giou * w, axis=-1, keepdims=True)   # [1, 1]


def matched_span_losses(pred_l2m, tgt_2m, w_1m):
    L, _, MPAD = pred_l2m.shape
    return pl.pallas_call(
        _span_loss_kernel,
        out_shape=(jax.ShapeDtypeStruct((L, 1, 1), jnp.float32),
                   jax.ShapeDtypeStruct((L, 1, 1), jnp.float32)),
        grid=(L,),
        in_specs=[
            pl.BlockSpec((None, 2, MPAD), lambda l: (l, 0, 0)),
            # targets / weights identical for every layer -> single upload,
            # replicated via constant index_maps
            pl.BlockSpec((2, MPAD), lambda l: (0, 0)),
            pl.BlockSpec((1, MPAD), lambda l: (0, 0)),
        ],
        out_specs=(pl.BlockSpec((None, 1, 1), lambda l: (l, 0, 0)),
                   pl.BlockSpec((None, 1, 1), lambda l: (l, 0, 0))),
        compiler_params=pltpu.CompilerParams(dimension_semantics=("parallel",)),
    )(pred_l2m, tgt_2m, w_1m)


# ---------------------------------------------------------------------------
# Host glue
# ---------------------------------------------------------------------------
def _hungarian(cost):
    """Exact min-cost assignment (potentials / Jonker-Volgenant style, O(n^2 m))
    for cost [n, m] with n <= m. Returns (row_ind, col_ind) like
    scipy.optimize.linear_sum_assignment."""
    # TODO(synk): combinatorial assignment has no clean Pallas equivalent; solved on host.
    cost = np.asarray(cost, dtype=np.float64)
    n, m = cost.shape
    if n == 0:
        return np.zeros(0, np.int64), np.zeros(0, np.int64)
    assert n <= m, "need #targets <= #queries"
    INF = np.inf
    u = np.zeros(n + 1)
    v = np.zeros(m + 1)
    p = np.zeros(m + 1, dtype=np.int64)      # p[j] = row matched to column j (1-based), 0 = free
    way = np.zeros(m + 1, dtype=np.int64)
    for i in range(1, n + 1):
        p[0] = i
        j0 = 0
        minv = np.full(m + 1, INF)
        used = np.zeros(m + 1, dtype=bool)
        while True:
            used[j0] = True
            i0 = p[j0]
            free = ~used[1:]
            cur = cost[i0 - 1, :] - u[i0] - v[1:]
            improve = free & (cur < minv[1:])
            minv[1:][improve] = cur[improve]
            way[1:][improve] = j0
            cand = np.where(free, minv[1:], INF)
            j1 = int(np.argmin(cand)) + 1
            delta = cand[j1 - 1]
            u[p[used]] += delta
            v[used] -= delta
            minv[~used] -= delta
            j0 = j1
            if p[j0] == 0:
                break
        while True:                           # augmenting path
            j1 = way[j0]
            p[j0] = p[j1]
            j0 = j1
            if j0 == 0:
                break
    rows, cols = [], []
    for j in range(1, m + 1):
        if p[j] != 0:
            rows.append(int(p[j]) - 1)
            cols.append(j - 1)
    order = np.argsort(rows)
    return np.asarray(rows, np.int64)[order], np.asarray(cols, np.int64)[order]


def _chunk_targets(n_queries, diagram_length):
    """Replicates torch.Tensor.chunk(diagram_length) + per-chunk fill_(i)."""
    chunk_size = math.ceil(n_queries / diagram_length)
    tgt = np.zeros(n_queries, dtype=np.int32)
    for i, start in enumerate(range(0, n_queries, chunk_size)):
        tgt[start:start + chunk_size] = i
    return tgt


class SetCriterion:
    def __init__(self, cost_class=1.0, cost_span=1.0, cost_giou=1.0, use_aux=True):
        self.cost_class = float(cost_class)
        self.cost_span = float(cost_span)
        self.cost_giou = float(cost_giou)
        self.use_aux = use_aux

    def __call__(self, span_pred, diagram_features_list,
                 diagram_memory_queries_similarity, ground_truth):
        span_pred = jnp.asarray(span_pred, jnp.float32)
        sim = jnp.asarray(diagram_memory_queries_similarity, jnp.float32)
        if not self.use_aux:
            span_pred = span_pred[-1:]
            sim = sim[-1:]
        n_layers, B, Q, _ = span_pred.shape
        C = sim.shape[-1]

        # ---- parse ground truth (host glue) ----
        span_tgt_id_map, span_tgt, diagram_tgt = [], [], []
        for sample in ground_truth:
            s_spans, s_ids, s_map, count = [], [], {}, 0
            for key, value in sample.items():
                for i, span in enumerate(value):
                    s_spans.append(span)
                    s_ids.append(key)
                    s_map[count] = (key, i)
                    count += 1
            span_tgt.append(s_spans)
            diagram_tgt.append(s_ids)
            span_tgt_id_map.append(s_map)

        sizes = [len(s) for s in span_tgt]
        Tmax = max(sizes)
        assert 0 < Tmax <= Q
        # static, lane-dense target padding (multiple of 128) -> unmasked stores,
        # no recompile when the batch's target count changes (up to 128).
        TPAD = _round_up(Tmax, _LANES)

        tgt_spans_t = np.zeros((B, 2, TPAD), np.float32)
        tgt_spans_t[:, 1, :] = 1.0                       # benign padding span (0, 1)
        tgt_ids = np.full((B, 1, TPAD), -1, np.int32)    # -1 never matches any class id
        for b in range(B):
            for t, (s, k) in enumerate(zip(span_tgt[b], diagram_tgt[b])):
                tgt_spans_t[b, 0, t] = s[0]
                tgt_spans_t[b, 1, t] = s[1]
                tgt_ids[b, 0, t] = k

        # ---- kernel 1: matching cost (async dispatch, TB samples per step) ----
        if B >= 4:
            tb = min(8, B // 2)                          # keep >= 2 grid steps for megacore
            while B % tb:
                tb -= 1
        else:
            tb = 1
        costs = pairwise_matching_cost(
            sim[-1], span_pred[-1],
            jnp.asarray(tgt_spans_t), jnp.asarray(tgt_ids),
            self.cost_class, self.cost_span, self.cost_giou, tb)

        # ---- kernel 2: set-guidance CE for ALL layers, launched before the blocking
        #      device_get so the TPU works while the host runs the Hungarian solve ----
        N = B * Q
        TN = min(_round_up(N, 8), _CE_TILE_ROWS)
        NPAD = _round_up(N, TN)
        diagram_lengths = [int(f.shape[0]) for f in diagram_features_list]
        ce_tgt = np.full((NPAD, 1), -1, np.int32)        # -1 rows are masked in-kernel
        ce_tgt[:N, 0] = np.stack(
            [_chunk_targets(Q, dl) for dl in diagram_lengths]).reshape(-1)
        logits_lnc = sim.reshape(n_layers, N, C)
        if NPAD != N:
            logits_lnc = jnp.pad(logits_lnc, ((0, 0), (0, NPAD - N), (0, 0)))
        ce_losses = set_guidance_cross_entropy(
            logits_lnc, jnp.asarray(ce_tgt), N, TN)      # [L, 1, 1]

        # ---- host: Hungarian assignment on the valid slice of the cost matrix ----
        # only transfer the (rounded-to-8) valid target columns, not all TPAD=128.
        T8 = _round_up(Tmax, 8)
        costs_np = np.asarray(jax.device_get(costs[:, :, :T8]))
        matching_result = []
        for b in range(B):
            t_rows, q_cols = _hungarian(costs_np[b, :, :sizes[b]].T)   # rows=targets, cols=queries
            matching_result.append((q_cols, t_rows))                    # (index_pred, index_tgt)

        # ---- gather matched pred/tgt spans once for all layers (static shapes) ----
        sample_idx, query_idx, tgt_list = [], [], []
        for b, (ipred, itgt) in enumerate(matching_result):
            for i, j in zip(ipred, itgt):
                sample_idx.append(b)
                query_idx.append(int(i))
                key, kk = span_tgt_id_map[b][int(j)]
                tgt_list.append(ground_truth[b][key][kk])
        M = len(tgt_list)
        MPAD = _round_up(max(M, 1), _LANES)

        # pad index arrays to a static MPAD (sentinel index 0); padded columns get
        # weight 0 inside kernel 3, so the gathered garbage contributes exactly 0
        # and neither the gather nor the kernel retrace when M changes.
        sidx = np.zeros(MPAD, np.int32)
        qidx = np.zeros(MPAD, np.int32)
        sidx[:M] = sample_idx
        qidx[:M] = query_idx
        matched_pred = span_pred[:, jnp.asarray(sidx), jnp.asarray(qidx), :]   # [L, MPAD, 2]
        matched_pred = jnp.transpose(matched_pred, (0, 2, 1))                  # [L, 2, MPAD]

        tgt_2m = np.zeros((2, MPAD), np.float32)
        tgt_2m[:, :M] = np.asarray(tgt_list, np.float32).T
        w_1m = np.zeros((1, MPAD), np.float32)
        w_1m[0, :M] = 1.0 / M                            # 1/M folded into the weight row

        # ---- kernel 3: L1 + GIoU losses for all layers in one call ----
        l1_losses, giou_losses = matched_span_losses(
            matched_pred, jnp.asarray(tgt_2m), jnp.asarray(w_1m))

        losses = {}
        for layer_i in range(n_layers):
            name = f'/layer_{layer_i}' if layer_i != n_layers - 1 else ''
            losses[f'loss/span/l1{name}'] = l1_losses[layer_i, 0, 0]
            losses[f'loss/span/giou{name}'] = giou_losses[layer_i, 0, 0]
            losses[f'loss/set_guidance{name}'] = ce_losses[layer_i, 0, 0]
        return losses


if __name__ == "__main__":
    key = jax.random.PRNGKey(0)
    L, B, Q, C, F = 2, 2, 8, 4, 32
    k1, k2, k3 = jax.random.split(key, 3)

    starts = jax.random.uniform(k1, (L, B, Q, 1), minval=0.0, maxval=0.5)
    lengths = jax.random.uniform(k2, (L, B, Q, 1), minval=0.1, maxval=0.4)
    span_pred = jnp.concatenate([starts, starts + lengths], axis=-1).astype(jnp.float32)
    similarity = jax.random.normal(k3, (L, B, Q, C), dtype=jnp.float32)

    diagram_features_list = [
        jax.random.normal(jax.random.PRNGKey(1), (3, F), dtype=jnp.float32),
        jax.random.normal(jax.random.PRNGKey(2), (4, F), dtype=jnp.float32),
    ]
    ground_truth = [
        {0: [(0.10, 0.30), (0.50, 0.70)], 2: [(0.20, 0.60)]},
        {1: [(0.00, 0.40)], 3: [(0.60, 0.90), (0.30, 0.55)]},
    ]

    criterion = SetCriterion(cost_class=1.0, cost_span=1.0, cost_giou=1.0, use_aux=True)
    losses = criterion(span_pred, diagram_features_list, similarity, ground_truth)
    for v in losses.values():
        jax.block_until_ready(v)
    print("KERNEL_OK")
</pallas_src>

<mosaic_0001>
module attributes {stable_mosaic.version = 11 : i64} {
  func.func @_cost_kernel(%arg0: i32, %arg1: memref<1x8x4xf32, #tpu.memory_space<vmem>>, %arg2: memref<1x8x2xf32, #tpu.memory_space<vmem>>, %arg3: memref<1x2x128xf32, #tpu.memory_space<vmem>>, %arg4: memref<1x1x128xi32, #tpu.memory_space<vmem>>, %arg5: memref<1x8x128xf32, #tpu.memory_space<vmem>>) attributes {dimension_semantics = [#tpu.dimension_semantics<parallel>], iteration_bounds = array<i64: 2>, scalar_prefetch = 0 : i64, scratch_operands = 0 : i64, tpu.core_type = #tpu.core_type<tc>, window_params = [{transform_indices = @transform_0, window_bounds = array<i64: 1, 8, 4>}, {transform_indices = @transform_1, window_bounds = array<i64: 1, 8, 2>}, {transform_indices = @transform_2, window_bounds = array<i64: 1, 2, 128>}, {transform_indices = @transform_3, window_bounds = array<i64: 1, 1, 128>}, {transform_indices = @transform_4, window_bounds = array<i64: 1, 8, 128>}]} {
    %c0 = arith.constant 0 : index
    %c0_0 = arith.constant 0 : index
    %c0_1 = arith.constant 0 : index
    %0 = vector.load %arg1[%c0, %c0_0, %c0_1] : memref<1x8x4xf32, #tpu.memory_space<vmem>>, vector<1x8x4xf32>
    %cst = arith.constant dense<0xFF800000> : vector<1x8xf32>
    %1 = vector.multi_reduction <maximumf>, %0, %cst [2] : vector<1x8x4xf32> to vector<1x8xf32>
    %2 = vector.shape_cast %1 : vector<1x8xf32> to vector<1x8x1xf32>
    %3 = vector.broadcast %2 : vector<1x8x1xf32> to vector<1x8x4xf32>
    %4 = arith.subf %0, %3 : vector<1x8x4xf32>
    %5 = math.exp %4 : vector<1x8x4xf32>
    %cst_2 = arith.constant dense<0.000000e+00> : vector<1x8xf32>
    %6 = vector.multi_reduction <add>, %5, %cst_2 [2] : vector<1x8x4xf32> to vector<1x8xf32>
    %7 = vector.shape_cast %6 : vector<1x8xf32> to vector<1x8x1xf32>
    %8 = tpu.reciprocal %7 {approx = true} : vector<1x8x1xf32> -> vector<1x8x1xf32>
    %9 = vector.broadcast %8 : vector<1x8x1xf32> to vector<1x8x4xf32>
    %10 = arith.mulf %5, %9 : vector<1x8x4xf32>
    %c0_3 = arith.constant 0 : index
    %c0_4 = arith.constant 0 : index
    %c0_5 = arith.constant 0 : index
    %11 = vector.load %arg4[%c0_3, %c0_4, %c0_5] : memref<1x1x128xi32, #tpu.memory_space<vmem>>, vector<1x1x128xi32>
    %cst_6 = arith.constant 0.000000e+00 : f32
    %12 = vector.broadcast %cst_6 : f32 to vector<1x8x128xf32>
    %13 = vector.extract_strided_slice %10 {offsets = [0, 0, 0], sizes = [1, 8, 1], strides = [1, 1, 1]} : vector<1x8x4xf32> to vector<1x8x1xf32>
    %c0_i32 = arith.constant 0 : i32
    %14 = vector.broadcast %c0_i32 : i32 to vector<1x1x128xi32>
    %15 = arith.cmpi eq, %11, %14 : vector<1x1x128xi32>
    %16 = arith.extui %15 : vector<1x1x128xi1> to vector<1x1x128xi32>
    %17 = arith.sitofp %16 : vector<1x1x128xi32> to vector<1x1x128xf32>
    %18 = vector.broadcast %13 : vector<1x8x1xf32> to vector<1x8x128xf32>
    %19 = vector.broadcast %17 : vector<1x1x128xf32> to vector<1x8x128xf32>
    %20 = arith.mulf %18, %19 : vector<1x8x128xf32>
    %21 = arith.subf %12, %20 : vector<1x8x128xf32>
    %22 = vector.extract_strided_slice %10 {offsets = [0, 0, 1], sizes = [1, 8, 1], strides = [1, 1, 1]} : vector<1x8x4xf32> to vector<1x8x1xf32>
    %c1_i32 = arith.constant 1 : i32
    %23 = vector.broadcast %c1_i32 : i32 to vector<1x1x128xi32>
    %24 = arith.cmpi eq, %11, %23 : vector<1x1x128xi32>
    %25 = arith.extui %24 : vector<1x1x128xi1> to vector<1x1x128xi32>
    %26 = arith.sitofp %25 : vector<1x1x128xi32> to vector<1x1x128xf32>
    %27 = vector.broadcast %22 : vector<1x8x1xf32> to vector<1x8x128xf32>
    %28 = vector.broadcast %26 : vector<1x1x128xf32> to vector<1x8x128xf32>
    %29 = arith.mulf %27, %28 : vector<1x8x128xf32>
    %30 = arith.subf %21, %29 : vector<1x8x128xf32>
    %31 = vector.extract_strided_slice %10 {offsets = [0, 0, 2], sizes = [1, 8, 1], strides = [1, 1, 1]} : vector<1x8x4xf32> to vector<1x8x1xf32>
    %c2_i32 = arith.constant 2 : i32
    %32 = vector.broadcast %c2_i32 : i32 to vector<1x1x128xi32>
    %33 = arith.cmpi eq, %11, %32 : vector<1x1x128xi32>
    %34 = arith.extui %33 : vector<1x1x128xi1> to vector<1x1x128xi32>
    %35 = arith.sitofp %34 : vector<1x1x128xi32> to vector<1x1x128xf32>
    %36 = vector.broadcast %31 : vector<1x8x1xf32> to vector<1x8x128xf32>
    %37 = vector.broadcast %35 : vector<1x1x128xf32> to vector<1x8x128xf32>
    %38 = arith.mulf %36, %37 : vector<1x8x128xf32>
    %39 = arith.subf %30, %38 : vector<1x8x128xf32>
    %40 = vector.extract_strided_slice %10 {offsets = [0, 0, 3], sizes = [1, 8, 1], strides = [1, 1, 1]} : vector<1x8x4xf32> to vector<1x8x1xf32>
    %c3_i32 = arith.constant 3 : i32
    %41 = vector.broadcast %c3_i32 : i32 to vector<1x1x128xi32>
    %42 = arith.cmpi eq, %11, %41 : vector<1x1x128xi32>
    %43 = arith.extui %42 : vector<1x1x128xi1> to vector<1x1x128xi32>
    %44 = arith.sitofp %43 : vector<1x1x128xi32> to vector<1x1x128xf32>
    %45 = vector.broadcast %40 : vector<1x8x1xf32> to vector<1x8x128xf32>
    %46 = vector.broadcast %44 : vector<1x1x128xf32> to vector<1x8x128xf32>
    %47 = arith.mulf %45, %46 : vector<1x8x128xf32>
    %48 = arith.subf %39, %47 : vector<1x8x128xf32>
    %c0_7 = arith.constant 0 : index
    %c0_8 = arith.constant 0 : index
    %c0_9 = arith.constant 0 : index
    %49 = vector.load %arg2[%c0_7, %c0_8, %c0_9] : memref<1x8x2xf32, #tpu.memory_space<vmem>>, vector<1x8x2xf32>
    %50 = vector.extract_strided_slice %49 {offsets = [0, 0, 0], sizes = [1, 8, 1], strides = [1, 1, 1]} : vector<1x8x2xf32> to vector<1x8x1xf32>
    %51 = vector.extract_strided_slice %49 {offsets = [0, 0, 1], sizes = [1, 8, 1], strides = [1, 1, 1]} : vector<1x8x2xf32> to vector<1x8x1xf32>
    %c0_10 = arith.constant 0 : index
    %c0_11 = arith.constant 0 : index
    %c0_12 = arith.constant 0 : index
    %52 = vector.load %arg3[%c0_10, %c0_11, %c0_12] : memref<1x2x128xf32, #tpu.memory_space<vmem>>, vector<1x2x128xf32>
    %53 = vector.extract_strided_slice %52 {offsets = [0, 0, 0], sizes = [1, 1, 128], strides = [1, 1, 1]} : vector<1x2x128xf32> to vector<1x1x128xf32>
    %54 = vector.extract_strided_slice %52 {offsets = [0, 1, 0], sizes = [1, 1, 128], strides = [1, 1, 1]} : vector<1x2x128xf32> to vector<1x1x128xf32>
    %55 = vector.broadcast %50 : vector<1x8x1xf32> to vector<1x8x128xf32>
    %56 = vector.broadcast %53 : vector<1x1x128xf32> to vector<1x8x128xf32>
    %57 = arith.subf %55, %56 : vector<1x8x128xf32>
    %58 = math.absf %57 : vector<1x8x128xf32>
    %59 = vector.broadcast %51 : vector<1x8x1xf32> to vector<1x8x128xf32>
    %60 = vector.broadcast %54 : vector<1x1x128xf32> to vector<1x8x128xf32>
    %61 = arith.subf %59, %60 : vector<1x8x128xf32>
    %62 = math.absf %61 : vector<1x8x128xf32>
    %63 = arith.addf %58, %62 : vector<1x8x128xf32>
    %64 = vector.broadcast %51 : vector<1x8x1xf32> to vector<1x8x128xf32>
    %65 = vector.broadcast %54 : vector<1x1x128xf32> to vector<1x8x128xf32>
    %66 = arith.minimumf %64, %65 : vector<1x8x128xf32>
    %67 = vector.broadcast %50 : vector<1x8x1xf32> to vector<1x8x128xf32>
    %68 = vector.broadcast %53 : vector<1x1x128xf32> to vector<1x8x128xf32>
    %69 = arith.maximumf %67, %68 : vector<1x8x128xf32>
    %70 = arith.subf %66, %69 : vector<1x8x128xf32>
    %cst_13 = arith.constant 0.000000e+00 : f32
    %71 = vector.broadcast %cst_13 : f32 to vector<1x8x128xf32>
    %72 = arith.maximumf %70, %71 : vector<1x8x128xf32>
    %73 = arith.subf %51, %50 : vector<1x8x1xf32>
    %74 = arith.subf %54, %53 : vector<1x1x128xf32>
    %75 = vector.broadcast %73 : vector<1x8x1xf32> to vector<1x8x128xf32>
    %76 = vector.broadcast %74 : vector<1x1x128xf32> to vector<1x8x128xf32>
    %77 = arith.addf %75, %76 : vector<1x8x128xf32>
    %78 = arith.subf %77, %72 : vector<1x8x128xf32>
    %79 = vector.broadcast %51 : vector<1x8x1xf32> to vector<1x8x128xf32>
    %80 = vector.broadcast %54 : vector<1x1x128xf32> to vector<1x8x128xf32>
    %81 = arith.maximumf %79, %80 : vector<1x8x128xf32>
    %82 = vector.broadcast %50 : vector<1x8x1xf32> to vector<1x8x128xf32>
    %83 = vector.broadcast %53 : vector<1x1x128xf32> to vector<1x8x128xf32>
    %84 = arith.minimumf %82, %83 : vector<1x8x128xf32>
    %85 = arith.subf %81, %84 : vector<1x8x128xf32>
    %cst_14 = arith.constant 0.000000e+00 : f32
    %86 = vector.broadcast %cst_14 : f32 to vector<1x8x128xf32>
    %87 = arith.maximumf %85, %86 : vector<1x8x128xf32>
    %cst_15 = arith.constant 9.99999997E-7 : f32
    %88 = vector.broadcast %cst_15 : f32 to vector<1x8x128xf32>
    %89 = arith.maximumf %78, %88 : vector<1x8x128xf32>
    %90 = tpu.reciprocal %89 {approx = true} : vector<1x8x128xf32> -> vector<1x8x128xf32>
    %cst_16 = arith.constant 9.99999997E-7 : f32
    %91 = vector.broadcast %cst_16 : f32 to vector<1x8x128xf32>
    %92 = arith.maximumf %87, %91 : vector<1x8x128xf32>
    %93 = tpu.reciprocal %92 {approx = true} : vector<1x8x128xf32> -> vector<1x8x128xf32>
    %94 = arith.mulf %72, %90 : vector<1x8x128xf32>
    %95 = arith.subf %87, %78 : vector<1x8x128xf32>
    %96 = arith.mulf %95, %93 : vector<1x8x128xf32>
    %97 = arith.subf %94, %96 : vector<1x8x128xf32>
    %cst_17 = arith.constant 1.000000e+00 : f32
    %98 = vector.broadcast %cst_17 : f32 to vector<1x8x128xf32>
    %99 = arith.mulf %98, %48 : vector<1x8x128xf32>
    %cst_18 = arith.constant 1.000000e+00 : f32
    %100 = vector.broadcast %cst_18 : f32 to vector<1x8x128xf32>
    %101 = arith.mulf %100, %63 : vector<1x8x128xf32>
    %102 = arith.addf %99, %101 : vector<1x8x128xf32>
    %cst_19 = arith.constant 1.000000e+00 : f32
    %103 = vector.broadcast %cst_19 : f32 to vector<1x8x128xf32>
    %104 = arith.mulf %103, %97 : vector<1x8x128xf32>
    %105 = arith.subf %102, %104 : vector<1x8x128xf32>
    %c0_20 = arith.constant 0 : index
    %c0_21 = arith.constant 0 : index
    %c0_22 = arith.constant 0 : index
    %106 = vector.load %arg5[%c0_20, %c0_21, %c0_22] : memref<1x8x128xf32, #tpu.memory_space<vmem>>, vector<1x8x128xf32>
    tpu.vector_store %arg5[%c0_20, %c0_21, %c0_22], %105 {strides = array<i32>} : memref<1x8x128xf32, #tpu.memory_space<vmem>>, vector<1x8x128xf32>,
    return
  }
  func.func @transform_0(%arg0: i32) -> (i32, i32, i32) {
    %c0_i32 = arith.constant 0 : i32
    %c0_i32_0 = arith.constant 0 : i32
    %c0_i32_1 = arith.constant 0 : i32
    return %arg0, %c0_i32, %c0_i32_0 : i32, i32, i32
  }
  func.func @transform_1(%arg0: i32) -> (i32, i32, i32) {
    %c0_i32 = arith.constant 0 : i32
    %c0_i32_0 = arith.constant 0 : i32
    %c0_i32_1 = arith.constant 0 : i32
    return %arg0, %c0_i32, %c0_i32_0 : i32, i32, i32
  }
  func.func @transform_2(%arg0: i32) -> (i32, i32, i32) {
    %c0_i32 = arith.constant 0 : i32
    %c0_i32_0 = arith.constant 0 : i32
    %c0_i32_1 = arith.constant 0 : i32
    return %arg0, %c0_i32, %c0_i32_0 : i32, i32, i32
  }
  func.func @transform_3(%arg0: i32) -> (i32, i32, i32) {
    %c0_i32 = arith.constant 0 : i32
    %c0_i32_0 = arith.constant 0 : i32
    %c0_i32_1 = arith.constant 0 : i32
    return %arg0, %c0_i32, %c0_i32_0 : i32, i32, i32
  }
  func.func @transform_4(%arg0: i32) -> (i32, i32, i32) {
    %c0_i32 = arith.constant 0 : i32
    %c0_i32_0 = arith.constant 0 : i32
    %c0_i32_1 = arith.constant 0 : i32
    return %arg0, %c0_i32, %c0_i32_0 : i32, i32, i32
  }
}

</mosaic_0001>

<llo_original>
// kernel: tpu_custom_call.1
$region0: #{tpu_custom_call.1}
  #allocation0 [shape = 'u32[]', space=smem, size = 0x4, offset = 0x4, fixed_abs, tag = 'smem constant byte address 0x4 - core index']
  #allocation1 [shape = 'u32[144,128]{1,0:T(1,128)}', space=vmem, size = 0x12000, scoped, tag = 'internal scratch']
  %s0 = inlined_call_operand.vmem [shape: f32[2,8,4], index: 0, kind: input, shape index: {}]
  %s1 = inlined_call_operand.vmem [shape: f32[2,8,2], index: 1, kind: input, shape index: {}]
  %s2 = inlined_call_operand.vmem [shape: f32[2,2,128], index: 2, kind: input, shape index: {}]
  %s3 = inlined_call_operand.vmem [shape: s32[2,1,128], index: 3, kind: input, shape index: {}]
  %s4 = inlined_call_operand.hbm [shape: f32[2,8,128], index: 4, kind: output, shape index: {}]
  %s5 = sld [smem:[#allocation0]]
  $region49: #{tpu_custom_call.1} parent=0
    _
  %s7 = ssub.s32 1, %s5
  %s8 = scalar_select 0, %s7, %s5
  $region1: #{tpu_custom_call.1} parent=0
    #allocation2 [shape = 'u8[8192]{0}', space=vmem, size = 0x2000, scoped, tag = 'output window, operand 0']
    #allocation3 [shape = 's32[2]{0}', space=sflag, size = 0x8, scoped, tag = 'scoped memory for tpu_custom_call.1']
    %9 = vsyncpa [#allocation3], 0
    %s10 = scalar_lea.sflag [#allocation3], 1
    %11 = vsyncpa %s10, 0
    loop: start=0, step=1, limit=4
    $region2: #{tpu_custom_call.1} parent=1 // loop_pre_header
      _
    $region3: #{tpu_custom_call.1} parent=1 // loop_header
      %s13 = sphi 0, %s17
      %p14 = scmp.ge.s32.totalorder %s13, 4
      %s23 = sphi 0, %s25
      %s26 = sphi 0, %s23
      %s27 = sphi 0, %s26
      %s43 = sphi 0, %s27
      %s49 = sphi 0, %s51
      %s52 = sphi 0, %s49
      %s53 = sphi 0, %s52
      %s69 = sphi 0, %s53
      %s75 = sphi 0, %s77
      %s78 = sphi 0, %s75
      %s79 = sphi 0, %s78
      %s95 = sphi 0, %s79
      %s101 = sphi 0, %s103
      %s104 = sphi 0, %s101
      %s105 = sphi 0, %s104
      %s121 = sphi 0, %s105
      %s127 = sphi 0, %s129
      %s130 = sphi 0, %s127
      %s131 = sphi 0, %s130
      %s147 = sphi 0, %s131
    $region4: #{tpu_custom_call.1} parent=1 // loop_header_branch
      %16 = sbr.rel (%p14) target = $region8
    $region5: #{tpu_custom_call.1} parent=1 // loop_body
      %s18 = ssub.s32 %s13, 1
      %s19 = ssub.s32 %s13, 2
      %s20 = sadd.s32 %s13, 1
      %s21 = ssub.s32 %s13, %s20
      %p22 = scmp.eq.s32.totalorder %s21, 0
      %s24 = sadd.s32 %s23, 1
      %s25 = scalar_select %p22, %s23, %s24
      %p28 = pneg %p22
      %p29 = scmp.eq.s32.totalorder %s13, 1
      %p30 = por %p28, %p29
      %p31 = scmp.ne.s32.totalorder %s23, %s26
      %p32 = scmp.eq.s32.totalorder %s13, 0
      %p33 = por %p31, %p32
      %p34 = scmp.ne.s32.totalorder %s23, %s26
      %p35 = scmp.eq.s32.totalorder %s18, 1
      %p36 = por %p34, %p35
      %p37 = scmp.ne.s32.totalorder %s26, %s27
      %p38 = scmp.eq.s32.totalorder %s18, 0
      %p39 = por %p37, %p38
      %p40 = scmp.ne.s32.totalorder %s26, %s27
      %p41 = scmp.eq.s32.totalorder %s19, 1
      %p42 = por %p40, %p41
      %p44 = scmp.ne.s32.totalorder %s27, %s43
      %p45 = scmp.eq.s32.totalorder %s19, 0
      %p46 = por %p44, %p45
      %s47 = ssub.s32 %s13, %s20
      %p48 = scmp.eq.s32.totalorder %s47, 0
      %s50 = sadd.s32 %s49, 1
      %s51 = scalar_select %p48, %s49, %s50
      %p54 = pneg %p48
      %p55 = scmp.eq.s32.totalorder %s13, 1
      %p56 = por %p54, %p55
      %p57 = scmp.ne.s32.totalorder %s49, %s52
      %p58 = scmp.eq.s32.totalorder %s13, 0
      %p59 = por %p57, %p58
      %p60 = scmp.ne.s32.totalorder %s49, %s52
      %p61 = scmp.eq.s32.totalorder %s18, 1
      %p62 = por %p60, %p61
      %p63 = scmp.ne.s32.totalorder %s52, %s53
      %p64 = scmp.eq.s32.totalorder %s18, 0
      %p65 = por %p63, %p64
      %p66 = scmp.ne.s32.totalorder %s52, %s53
      %p67 = scmp.eq.s32.totalorder %s19, 1
      %p68 = por %p66, %p67
      %p70 = scmp.ne.s32.totalorder %s53, %s69
      %p71 = scmp.eq.s32.totalorder %s19, 0
      %p72 = por %p70, %p71
      %s73 = ssub.s32 %s13, %s20
      %p74 = scmp.eq.s32.totalorder %s73, 0
      %s76 = sadd.s32 %s75, 1
      %s77 = scalar_select %p74, %s75, %s76
      %p80 = pneg %p74
      %p81 = scmp.eq.s32.totalorder %s13, 1
      %p82 = por %p80, %p81
      %p83 = scmp.ne.s32.totalorder %s75, %s78
      %p84 = scmp.eq.s32.totalorder %s13, 0
      %p85 = por %p83, %p84
      %p86 = scmp.ne.s32.totalorder %s75, %s78
      %p87 = scmp.eq.s32.totalorder %s18, 1
      %p88 = por %p86, %p87
      %p89 = scmp.ne.s32.totalorder %s78, %s79
      %p90 = scmp.eq.s32.totalorder %s18, 0
      %p91 = por %p89, %p90
      %p92 = scmp.ne.s32.totalorder %s78, %s79
      %p93 = scmp.eq.s32.totalorder %s19, 1
      %p94 = por %p92, %p93
      %p96 = scmp.ne.s32.totalorder %s79, %s95
      %p97 = scmp.eq.s32.totalorder %s19, 0
      %p98 = por %p96, %p97
      %s99 = ssub.s32 %s13, %s20
      %p100 = scmp.eq.s32.totalorder %s99, 0
      %s102 = sadd.s32 %s101, 1
      %s103 = scalar_select %p100, %s101, %s102
      %p106 = pneg %p100
      %p107 = scmp.eq.s32.totalorder %s13, 1
      %p108 = por %p106, %p107
      %p109 = scmp.ne.s32.totalorder %s101, %s104
      %p110 = scmp.eq.s32.totalorder %s13, 0
      %p111 = por %p109, %p110
      %p112 = scmp.ne.s32.totalorder %s101, %s104
      %p113 = scmp.eq.s32.totalorder %s18, 1
      %p114 = por %p112, %p113
      %p115 = scmp.ne.s32.totalorder %s104, %s105
      %p116 = scmp.eq.s32.totalorder %s18, 0
      %p117 = por %p115, %p116
      %p118 = scmp.ne.s32.totalorder %s104, %s105
      %p119 = scmp.eq.s32.totalorder %s19, 1
      %p120 = por %p118, %p119
      %p122 = scmp.ne.s32.totalorder %s105, %s121
      %p123 = scmp.eq.s32.totalorder %s19, 0
      %p124 = por %p122, %p123
      %s125 = ssub.s32 %s13, %s20
      %p126 = scmp.eq.s32.totalorder %s125, 0
      %s128 = sadd.s32 %s127, 1
      %s129 = scalar_select %p126, %s127, %s128
      %p132 = pneg %p126
      %p133 = scmp.eq.s32.totalorder %s13, 1
      %p134 = por %p132, %p133
      %p135 = scmp.ne.s32.totalorder %s127, %s130
      %p136 = scmp.eq.s32.totalorder %s13, 0
      %p137 = por %p135, %p136
      %p138 = scmp.ne.s32.totalorder %s127, %s130
      %p139 = scmp.eq.s32.totalorder %s18, 1
      %p140 = por %p138, %p139
      %p141 = scmp.ne.s32.totalorder %s130, %s131
      %p142 = scmp.eq.s32.totalorder %s18, 0
      %p143 = por %p141, %p142
      %p144 = scmp.ne.s32.totalorder %s130, %s131
      %p145 = scmp.eq.s32.totalorder %s19, 1
      %p146 = por %p144, %p145
      %p148 = scmp.ne.s32.totalorder %s131, %s147
      %p149 = scmp.eq.s32.totalorder %s19, 0
      %p150 = por %p148, %p149
      %p151 = scmp.le.s32.totalorder 1, %s13
      %p152 = scmp.lt.s32.totalorder %s13, 3
      %p153 = pnand %p151, %p152
      %p154 = pneg %p153
      // Predicated region
      $region9: #{tpu_custom_call.1} parent=5 // pred_check
        _
      $region10: #{tpu_custom_call.1} parent=5 // pred_check_branch
        %156 = sbr.rel (%p153) target = $region12
      $region11: #{tpu_custom_call.1} parent=5 // pred_region
        %s157 = ssub.s32 %s13, 1
      $region12: #{tpu_custom_call.1} parent=5 // pred_fallthru
        _
      %p158 = scmp.lt.s32.totalorder %s13, 2
      // Predicated region
      $region13: #{tpu_custom_call.1} parent=5 // pred_check
        %p159 = pneg %p158
      $region14: #{tpu_custom_call.1} parent=5 // pred_check_branch
        %161 = sbr.rel (%p159) target = $region16
      $region15: #{tpu_custom_call.1} parent=5 // pred_region
        // Predicated region
        $region17: #{tpu_custom_call.1} parent=15 // pred_check
          %p162 = pneg %p33
        $region18: #{tpu_custom_call.1} parent=15 // pred_check_branch
          %164 = sbr.rel (%p162) target = $region20
        $region19: #{tpu_custom_call.1} parent=15 // pred_region
          %p165 = scmp.lt.s32.totalorder %s13, 1
          %s166 = scalar_select %p165, %s13, 1
          %s167 = smul.addr %s166, 8
          %s168 = scalar_lea.vmem %s0, %s167
        $region20: #{tpu_custom_call.1} parent=15 // pred_fallthru
          _
        // Predicated region
        $region21: #{tpu_custom_call.1} parent=15 // pred_check
          %p169 = pneg %p59
        $region22: #{tpu_custom_call.1} parent=15 // pred_check_branch
          %171 = sbr.rel (%p169) target = $region24
        $region23: #{tpu_custom_call.1} parent=15 // pred_region
          %p172 = scmp.lt.s32.totalorder %s13, 1
          %s173 = scalar_select %p172, %s13, 1
          %s174 = smul.addr %s173, 8
          %s175 = scalar_lea.vmem %s1, %s174
        $region24: #{tpu_custom_call.1} parent=15 // pred_fallthru
          _
        // Predicated region
        $region25: #{tpu_custom_call.1} parent=15 // pred_check
          %p176 = pneg %p85
        $region26: #{tpu_custom_call.1} parent=15 // pred_check_branch
          %178 = sbr.rel (%p176) target = $region28
        $region27: #{tpu_custom_call.1} parent=15 // pred_region
          %p179 = scmp.lt.s32.totalorder %s13, 1
          %s180 = scalar_select %p179, %s13, 1
          %s181 = smul.addr %s180, 2
          %s182 = scalar_lea.vmem %s2, %s181
        $region28: #{tpu_custom_call.1} parent=15 // pred_fallthru
          _
        // Predicated region
        $region29: #{tpu_custom_call.1} parent=15 // pred_check
          %p183 = pneg %p111
        $region30: #{tpu_custom_call.1} parent=15 // pred_check_branch
          %185 = sbr.rel (%p183) target = $region32
        $region31: #{tpu_custom_call.1} parent=15 // pred_region
          %p186 = scmp.lt.s32.totalorder %s13, 1
          %s187 = scalar_select %p186, %s13, 1
          %s188 = scalar_lea.vmem %s3, %s187
        $region32: #{tpu_custom_call.1} parent=15 // pred_fallthru
          _
      $region16: #{tpu_custom_call.1} parent=5 // pred_fallthru
        _
      %p189 = scmp.le.s32.totalorder 1, %s13
      %p190 = scmp.lt.s32.totalorder %s13, 3
      %p191 = pnand %p189, %p190
      %p192 = pneg %p191
      // Predicated region
      $region33: #{tpu_custom_call.1} parent=5 // pred_check
        _
      $region34: #{tpu_custom_call.1} parent=5 // pred_check_branch
        %194 = sbr.rel (%p191) target = $region36
      $region35: #{tpu_custom_call.1} parent=5 // pred_region
        %s195 = ssub.s32 %s13, 1
        %p196 = scmp.lt.s32.totalorder %s18, 1
        %s197 = scalar_select %p196, %s18, 1
        %s198 = smul.addr %s197, 8
        %s199 = scalar_lea.vmem %s0, %s198
        %p200 = pneg %p39
        %p201 = pneg %p36
        %p202 = scmp.lt.s32.totalorder %s18, 1
        %s203 = scalar_select %p202, %s18, 1
        %s204 = smul.addr %s203, 8
        %s205 = scalar_lea.vmem %s1, %s204
        %p206 = pneg %p65
        %p207 = pneg %p62
        %p208 = scmp.lt.s32.totalorder %s18, 1
        %s209 = scalar_select %p208, %s18, 1
        %s210 = smul.addr %s209, 2
        %s211 = scalar_lea.vmem %s2, %s210
        %p212 = pneg %p91
        %p213 = pneg %p88
        %p214 = scmp.lt.s32.totalorder %s18, 1
        %s215 = scalar_select %p214, %s18, 1
        %s216 = scalar_lea.vmem %s3, %s215
        %p217 = pneg %p117
        %p218 = pneg %p114
        %p219 = pneg %p143
        %p220 = pneg %p140
        %s221 = sand.u32 %s130, 1
        %s222 = scalar_lea.sflag [#allocation3], %s221
        %s223 = sand.u32 %s130, 1
        %s224 = smul.addr %s223, 8
        %s225 = scalar_lea.vmem [#allocation2], %s224
        %p226 = scmp.lt.s32.totalorder %s18, 1
        %s227 = scalar_select %p226, %s18, 1
        %s228 = smul.addr %s227, 8
        %s229 = scalar_lea.vmem %s0, %s228
        %p230 = scmp.lt.s32.totalorder %s18, 1
        %s231 = scalar_select %p230, %s18, 1
        %s232 = smul.addr %s231, 8
        %s233 = scalar_lea.vmem %s1, %s232
        %p234 = scmp.lt.s32.totalorder %s18, 1
        %s235 = scalar_select %p234, %s18, 1
        %s236 = smul.addr %s235, 2
        %s237 = scalar_lea.vmem %s2, %s236
        %p238 = scmp.lt.s32.totalorder %s18, 1
        %s239 = scalar_select %p238, %s18, 1
        %s240 = scalar_lea.vmem %s3, %s239
        %v241 = vld [vmem:[%s229] sm:$0xff]
        %vm242 = vcmask 31744
        %v243 = vsel %vm242, %v241, -inf
        %244 = vmax.xlane.f32.xlu0 %v243
        %v245 = vpop.xlane.xlu0 %244
        %v246 = vsub.f32 %v241, %v245
        %v247 = vmul.f32 %v246, 1.442695
        %v248 = vpow.pop %v247
        %v249 = vsel %vm242, %v248, 0.0
        %250 = vadd.xlane.f32.xlu0 %v249
        %v251 = vpop.xlane.xlu0 %250
        %v252 = vrcp.pop %v251
        %v253 = vmul.f32 %v248, %v252
        %v254 = vld [vmem:[%s240] sm:$0x1]
        %vm255 = vcmp.eq.s32.totalorder %v254, 0
        %v256 = vsel %vm255, 1, 0
        %v257 = vcvt.s32.f32 %v256
        %259 = vset.pattern.permute.xlu0 0
        %260 = vperm.xlu0 %259, %v253
        %v261 = vpop.permute.xlu0 %260
        %v264 = vlaneseq
        %v265 = vshrl.u32 %v264, 7
        %v266 = vsub.s32 0, %v265
        %v267 = vrot.slane %v257, %v266
        %v269 = vmul.f32 %v261, %v267
        %v270 = vsub.f32 0.0, %v269
        %vm271 = vcmp.eq.s32.totalorder %v254, 1
        %v272 = vsel %vm271, 1, 0
        %v273 = vcvt.s32.f32 %v272
        %274 = vset.pattern.permute.xlu0 1
        %275 = vperm.xlu0 %274, %v253
        %v276 = vpop.permute.xlu0 %275
        %v279 = vlaneseq
        %v280 = vshrl.u32 %v279, 7
        %v281 = vsub.s32 0, %v280
        %v282 = vrot.slane %v273, %v281
        %v284 = vmul.f32 %v276, %v282
        %v285 = vsub.f32 %v270, %v284
        %vm286 = vcmp.eq.s32.totalorder %v254, 2
        %v287 = vsel %vm286, 1, 0
        %v288 = vcvt.s32.f32 %v287
        %289 = vset.pattern.permute.xlu0 2
        %290 = vperm.xlu0 %289, %v253
        %v291 = vpop.permute.xlu0 %290
        %v294 = vlaneseq
        %v295 = vshrl.u32 %v294, 7
        %v296 = vsub.s32 0, %v295
        %v297 = vrot.slane %v288, %v296
        %v299 = vmul.f32 %v291, %v297
        %v300 = vsub.f32 %v285, %v299
        %vm301 = vcmp.eq.s32.totalorder %v254, 3
        %v302 = vsel %vm301, 1, 0
        %v303 = vcvt.s32.f32 %v302
        %304 = vset.pattern.permute.xlu0 3
        %305 = vperm.xlu0 %304, %v253
        %v306 = vpop.permute.xlu0 %305
        %v309 = vlaneseq
        %v310 = vshrl.u32 %v309, 7
        %v311 = vsub.s32 0, %v310
        %v312 = vrot.slane %v303, %v311
        %v314 = vmul.f32 %v306, %v312
        %v315 = vsub.f32 %v300, %v314
        %v316 = vld [vmem:[%s233] sm:$0xff]
        %v317 = vld [vmem:[%s237] sm:$0x3]
        %319 = vset.pattern.permute.xlu0 0
        %320 = vperm.xlu0 %319, %v316
        %v321 = vpop.permute.xlu0 %320
        %v323 = vlaneseq
        %v324 = vshrl.u32 %v323, 7
        %v325 = vsub.s32 0, %v324
        %v326 = vrot.slane %v317, %v325
        %v327 = vsub.f32 %v321, %v326
        %v328 = vand.u32 2147483647, %v327
        %329 = vset.pattern.permute.xlu0 1
        %330 = vperm.xlu0 %329, %v316
        %v331 = vpop.permute.xlu0 %330
        %v333 = vlaneseq
        %v334 = vshrl.u32 %v333, 7
        %v335 = vsub.s32 1, %v334
        %v336 = vrot.slane %v317, %v335
        %v337 = vsub.f32 %v331, %v336
        %v338 = vand.u32 2147483647, %v337
        %v339 = vadd.f32 %v328, %v338
        %v340 = vmin.f32 %v331, %v336
        %v341 = vmax.f32 %v321, %v326
        %v342 = vsub.f32 %v340, %v341
        %v343 = vmax.f32 %v342, 0.0
        %344 = vrot.lane.b32.xlu0 %v316, 1
        %v345 = vpop.permute.xlu0 %344
        %v347 = vsub.f32 %v316, %v345
        %v349 = vrot.slane %v317, 7
        %v351 = vsub.f32 %v317, %v349
        %353 = vset.pattern.permute.xlu0 1
        %354 = vperm.xlu0 %353, %v347
        %v355 = vpop.permute.xlu0 %354
        %v357 = vlaneseq
        %v358 = vshrl.u32 %v357, 7
        %v359 = vsub.s32 1, %v358
        %v360 = vrot.slane %v351, %v359
        %v361 = vadd.f32 %v355, %v360
        %v362 = vsub.f32 %v361, %v343
        %v363 = vmax.f32 %v331, %v336
        %v364 = vmin.f32 %v321, %v326
        %v365 = vsub.f32 %v363, %v364
        %v366 = vmax.f32 %v365, 0.0
        %v367 = vmax.f32 %v362, 1e-06
        %v368 = vrcp.pop %v367
        %v369 = vmax.f32 %v366, 1e-06
        %v370 = vrcp.pop %v369
        %v371 = vmul.f32 %v343, %v368
        %v372 = vsub.f32 %v366, %v362
        %v373 = vmul.f32 %v372, %v370
        %v374 = vsub.f32 %v371, %v373
        %v375 = vadd.f32 %v315, %v339
        %v376 = vsub.f32 %v375, %v374
        %377 = vst [vmem:[%s225] sm:$0xff] %v376
        %s378 = sand.u32 %s130, 1
        %s379 = scalar_lea.sflag [#allocation3], %s378
        %s380 = sand.u32 %s130, 1
        %s381 = smul.addr %s380, 8
        %s382 = scalar_lea.vmem [#allocation2], %s381
        // Predicated region
        $region37: #{tpu_custom_call.1} parent=35 // pred_check
          %p383 = pneg %p140
        $region38: #{tpu_custom_call.1} parent=35 // pred_check_branch
          %385 = sbr.rel (%p383) target = $region40
        $region39: #{tpu_custom_call.1} parent=35 // pred_region
          %s387 = ssub.s32 128, 128
          %388 = vsyncadd %s379, %s387
          %s389 = smul.addr %s18, 128
          %s390 = scalar_lea.hbm %s4, %s389
          %s392 = sshll.u32 %s382, 4
          %s393 = int_to_ptr.vmem [resolvable:$true] %s392
          %395 = dma.vmem_to_hbm [thread:$0]  %s393, 128, %s390, %s379
        $region40: #{tpu_custom_call.1} parent=35 // pred_fallthru
          _
      $region36: #{tpu_custom_call.1} parent=5 // pred_fallthru
        _
      %p396 = scmp.le.s32.totalorder 2, %s13
      // Predicated region
      $region41: #{tpu_custom_call.1} parent=5 // pred_check
        %p397 = pneg %p396
      $region42: #{tpu_custom_call.1} parent=5 // pred_check_branch
        %399 = sbr.rel (%p397) target = $region44
      $region43: #{tpu_custom_call.1} parent=5 // pred_region
        %s400 = ssub.s32 %s13, 2
        // Predicated region
        $region45: #{tpu_custom_call.1} parent=43 // pred_check
          %p401 = pneg %p146
        $region46: #{tpu_custom_call.1} parent=43 // pred_check_branch
          %403 = sbr.rel (%p401) target = $region48
        $region47: #{tpu_custom_call.1} parent=43 // pred_region
          %s404 = sand.u32 %s131, 1
          %s405 = scalar_lea.sflag [#allocation3], %s404
          %s406 = sand.u32 %s131, 1
          %s407 = smul.addr %s406, 8
          %s408 = scalar_lea.vmem [#allocation2], %s407
          %409 = dma.done %s405, 128
        $region48: #{tpu_custom_call.1} parent=43 // pred_fallthru
          _
      $region44: #{tpu_custom_call.1} parent=5 // pred_fallthru
        _
    $region6: #{tpu_custom_call.1} parent=1 // loop_footer
      %s17 = sadd.s32 1, %s13
    $region7: #{tpu_custom_call.1} parent=1 // loop_footer_branch
      %12 = sbr.rel target = $region3
    $region8: #{tpu_custom_call.1} parent=1 // loop_exit
      _
    %410 = vsyncpa [#allocation3], 1
    %s411 = scalar_lea.sflag [#allocation3], 1
    %412 = vsyncpa %s411, 1

</llo_original>
